<compile_context>
chip_gen: v5e
topology: v5e:2x2
jax: 0.10.0
libtpu: 0.0.40
codegen_flags: <defaults>
</compile_context>

<pallas_src>
import jax
import jax.numpy as jnp
from jax.experimental import pallas as pl
from jax.experimental.pallas import tpu as pltpu


def _softplus(x):
    # numerically-stable softplus, log1p for exact parity with the reference
    return jnp.maximum(x, 0.0) + jnp.log1p(jnp.exp(-jnp.abs(x)))


def _imip_loss_kernel(mo_ref, dmo_ref, dco_ref, inl_ref, outl_ref, out_ref):
    # mo_ref : (TM, C) maximizer responses (native dtype, cast here)
    # dmo_ref: (TM, 1) diag of maximizer responses
    # dco_ref: (TM, 1) diag of correspondence responses
    # inl_ref/outl_ref: (TM, 1) f32 {0,1} labels
    # out_ref: (1, 8) f32 resident accumulator:
    #   [inlier_term, outlier_max_term, outlier_corr_term, supp_term,
    #    num_inliers, num_outliers, 0, 0]
    i = pl.program_id(0)

    @pl.when(i == 0)
    def _():
        out_ref[...] = jnp.zeros_like(out_ref)

    mo = mo_ref[...].astype(jnp.float32)      # (TM, C)
    dmo = dmo_ref[...].astype(jnp.float32)    # (TM, 1)
    dco = dco_ref[...].astype(jnp.float32)    # (TM, 1)
    inl = inl_ref[...]                        # (TM, 1)
    outl = outl_ref[...]                      # (TM, 1)

    # single EUP pass over the big tile
    sp_mo = _softplus(mo)                                   # (TM, C)
    row_sp = jnp.sum(sp_mo, axis=1, keepdims=True)          # (TM, 1)

    sp_dmo = _softplus(dmo)                                 # (TM, 1)
    sp_neg_dco = _softplus(-dco)                            # (TM, 1)

    # per-row contributions (softplus(-x) = softplus(x) - x)
    a0 = inl * (sp_dmo - dmo)          # inlier maximizer loss
    a1 = outl * sp_dmo                 # outlier maximizer loss
    a2 = outl * sp_neg_dco             # outlier correspondence loss
    a3 = inl * (row_sp - sp_dmo)       # suppression loss (row sum minus diagonal)
    a4 = inl                           # num inliers
    a5 = outl                          # num outliers

    tm = mo.shape[0]
    lane = jax.lax.broadcasted_iota(jnp.int32, (tm, 8), 1)
    zeros = jnp.zeros((tm, 8), jnp.float32)
    stacked = (jnp.where(lane == 0, a0, zeros)
               + jnp.where(lane == 1, a1, zeros)
               + jnp.where(lane == 2, a2, zeros)
               + jnp.where(lane == 3, a3, zeros)
               + jnp.where(lane == 4, a4, zeros)
               + jnp.where(lane == 5, a5, zeros))

    # ONE fused reduction for all statistics, accumulated into the resident block
    out_ref[...] += jnp.sum(stacked, axis=0, keepdims=True)


def _pick_row_tile(C, row_tile):
    if (row_tile is not None and C % row_tile == 0
            and (row_tile % 8 == 0 or row_tile == C)):
        return row_tile
    if C % 8 != 0:
        return C            # single full block (block dims == array dims is allowed)
    tm = min(C, 512)
    while C % tm != 0:
        tm -= 8
    return tm


def _imip_loss_pallas(mo2, dmo, dco, inl, outl, row_tile=None):
    C = mo2.shape[0]
    tm = _pick_row_tile(C, row_tile)
    grid = (C // tm,)
    return pl.pallas_call(
        _imip_loss_kernel,
        out_shape=jax.ShapeDtypeStruct((1, 8), jnp.float32),
        grid_spec=pltpu.PrefetchScalarGridSpec(
            num_scalar_prefetch=0,
            grid=grid,
            in_specs=[
                pl.BlockSpec((tm, C), lambda i: (i, 0)),
                pl.BlockSpec((tm, 1), lambda i: (i, 0)),
                pl.BlockSpec((tm, 1), lambda i: (i, 0)),
                pl.BlockSpec((tm, 1), lambda i: (i, 0)),
                pl.BlockSpec((tm, 1), lambda i: (i, 0)),
            ],
            out_specs=pl.BlockSpec((1, 8), lambda i: (0, 0)),
        ),
        compiler_params=pltpu.CompilerParams(
            # row grid is a reduction axis (output accumulates across it)
            dimension_semantics=("arbitrary",)),
    )(mo2, dmo, dco, inl, outl)


class ImipLossPallas:
    """JAX/Pallas counterpart of imipnet's ImipLoss (concrete classic-IMIPS loss)."""

    def __init__(self, row_tile=None):
        self._row_tile = row_tile

    @property
    def needs_correspondence_outputs(self) -> bool:
        return True

    def forward_with_log_data(self, maximizer_outputs, correspondence_outputs,
                              inlier_labels, outlier_labels):
        C = maximizer_outputs.shape[0]
        assert maximizer_outputs.shape == (C, C, 1, 1)
        assert correspondence_outputs.shape == (C, C, 1, 1)
        # Keep native dtype for the big matrix; cast happens at load in the kernel.
        mo2 = maximizer_outputs.reshape(C, C)
        co2 = correspondence_outputs.reshape(C, C)
        # Only the diagonals are needed as vectors: extract here (C floats each)
        # instead of DMA-ing the full correspondence matrix into the kernel.
        dmo = jnp.diagonal(mo2).reshape(C, 1)
        dco = jnp.diagonal(co2).reshape(C, 1)
        # NOTE: inlier/outlier labels are assumed mutually exclusive (imipnet invariant).
        inl = inlier_labels.astype(jnp.float32).reshape(C, 1)
        outl = outlier_labels.astype(jnp.float32).reshape(C, 1)

        stats = _imip_loss_pallas(mo2, dmo, dco, inl, outl, self._row_tile)[0]
        inlier_term = stats[0]
        outlier_mo_term = stats[1]
        outlier_co_term = stats[2]
        supp_term = stats[3]
        loss = inlier_term + outlier_mo_term + outlier_co_term + supp_term
        log_data = {
            "loss": loss,
            "inlier_maximizer_loss": inlier_term,
            "outlier_maximizer_loss": outlier_mo_term,
            "outlier_correspondence_loss": outlier_co_term,
            "suppression_loss": supp_term,
            "num_inliers": stats[4],
            "num_outliers": stats[5],
        }
        return loss, log_data

    def forward(self, maximizer_outputs, correspondence_outputs,
                inlier_labels, outlier_labels):
        return self.forward_with_log_data(
            maximizer_outputs, correspondence_outputs,
            inlier_labels, outlier_labels)[0]

    __call__ = forward


def _reference_loss(mo, co, inl_b, outl_b):
    """Pure-jnp reference of the same loss for correctness checking."""
    C = mo.shape[0]
    mo2 = mo.reshape(C, C).astype(jnp.float32)
    co2 = co.reshape(C, C).astype(jnp.float32)
    inl = inl_b.astype(jnp.float32)
    outl = outl_b.astype(jnp.float32)
    sp = lambda x: jnp.maximum(x, 0.0) + jnp.log1p(jnp.exp(-jnp.abs(x)))
    dmo = jnp.diagonal(mo2)
    dco = jnp.diagonal(co2)
    eye = jnp.eye(C, dtype=jnp.float32)
    total = (jnp.sum(inl * sp(-dmo))
             + jnp.sum(outl * sp(dmo))
             + jnp.sum(outl * sp(-dco))
             + jnp.sum(sp(mo2) * (1.0 - eye) * inl[:, None]))
    return total


if __name__ == "__main__":
    C = 16   # number of interest-point channels (small demo size)
    key = jax.random.PRNGKey(0)
    k1, k2, k3, k4 = jax.random.split(key, 4)

    maximizer_outputs = jax.random.normal(k1, (C, C, 1, 1), dtype=jnp.float32)
    correspondence_outputs = jax.random.normal(k2, (C, C, 1, 1), dtype=jnp.float32)
    inlier_labels = jax.random.bernoulli(k3, 0.5, (C,))
    # outliers are a subset of the non-inlier channels
    outlier_labels = jnp.logical_and(jnp.logical_not(inlier_labels),
                                     jax.random.bernoulli(k4, 0.8, (C,)))

    # row_tile=8 -> grid of 2 row tiles, exercising the accumulation path.
    module = ImipLossPallas(row_tile=8)
    loss, log_data = module.forward_with_log_data(
        maximizer_outputs, correspondence_outputs, inlier_labels, outlier_labels)
    loss = jax.block_until_ready(loss)

    ref = _reference_loss(maximizer_outputs, correspondence_outputs,
                          inlier_labels, outlier_labels)
    assert jnp.allclose(loss, ref, rtol=1e-5, atol=1e-5), (loss, ref)
    assert jnp.allclose(log_data["num_inliers"],
                        jnp.sum(inlier_labels.astype(jnp.float32)))
    assert jnp.allclose(log_data["num_outliers"],
                        jnp.sum(outlier_labels.astype(jnp.float32)))

    print("KERNEL_OK")
</pallas_src>

<mosaic_0001>
module attributes {stable_mosaic.version = 11 : i64} {
  func.func @_imip_loss_kernel(%arg0: i32, %arg1: memref<8x16xf32, #tpu.memory_space<vmem>>, %arg2: memref<8x1xf32, #tpu.memory_space<vmem>>, %arg3: memref<8x1xf32, #tpu.memory_space<vmem>>, %arg4: memref<8x1xf32, #tpu.memory_space<vmem>>, %arg5: memref<8x1xf32, #tpu.memory_space<vmem>>, %arg6: memref<1x8xf32, #tpu.memory_space<vmem>>) attributes {dimension_semantics = [#tpu.dimension_semantics<arbitrary>], iteration_bounds = array<i64: 2>, scalar_prefetch = 0 : i64, scratch_operands = 0 : i64, tpu.core_type = #tpu.core_type<tc>, window_params = [{transform_indices = @transform_0, window_bounds = array<i64: 8, 16>}, {transform_indices = @transform_1, window_bounds = array<i64: 8, 1>}, {transform_indices = @transform_2, window_bounds = array<i64: 8, 1>}, {transform_indices = @transform_3, window_bounds = array<i64: 8, 1>}, {transform_indices = @transform_4, window_bounds = array<i64: 8, 1>}, {pipeline_mode = #tpu.pipeline_mode<synchronous>, transform_indices = @transform_5, window_bounds = array<i64: 1, 8>}]} {
    %c0_i32 = arith.constant 0 : i32
    %0 = arith.cmpi eq, %arg0, %c0_i32 : i32
    %1 = arith.extui %0 : i1 to i32
    %c0_i32_0 = arith.constant 0 : i32
    %2 = arith.cmpi ne, %1, %c0_i32_0 : i32
    scf.if %2 {
      %cst_24 = arith.constant 0.000000e+00 : f32
      %84 = vector.broadcast %cst_24 : f32 to vector<1x8xf32>
      %c0_25 = arith.constant 0 : index
      %c0_26 = arith.constant 0 : index
      %85 = vector.load %arg6[%c0_25, %c0_26] : memref<1x8xf32, #tpu.memory_space<vmem>>, vector<1x8xf32>
      tpu.vector_store %arg6[%c0_25, %c0_26], %84 {strides = array<i32>} : memref<1x8xf32, #tpu.memory_space<vmem>>, vector<1x8xf32>,
    } else {
    }
    %c0 = arith.constant 0 : index
    %c0_1 = arith.constant 0 : index
    %3 = vector.load %arg1[%c0, %c0_1] : memref<8x16xf32, #tpu.memory_space<vmem>>, vector<8x16xf32>
    %c0_2 = arith.constant 0 : index
    %c0_3 = arith.constant 0 : index
    %4 = vector.load %arg2[%c0_2, %c0_3] : memref<8x1xf32, #tpu.memory_space<vmem>>, vector<8x1xf32>
    %c0_4 = arith.constant 0 : index
    %c0_5 = arith.constant 0 : index
    %5 = vector.load %arg3[%c0_4, %c0_5] : memref<8x1xf32, #tpu.memory_space<vmem>>, vector<8x1xf32>
    %c0_6 = arith.constant 0 : index
    %c0_7 = arith.constant 0 : index
    %6 = vector.load %arg4[%c0_6, %c0_7] : memref<8x1xf32, #tpu.memory_space<vmem>>, vector<8x1xf32>
    %c0_8 = arith.constant 0 : index
    %c0_9 = arith.constant 0 : index
    %7 = vector.load %arg5[%c0_8, %c0_9] : memref<8x1xf32, #tpu.memory_space<vmem>>, vector<8x1xf32>
    %cst = arith.constant 0.000000e+00 : f32
    %8 = vector.broadcast %cst : f32 to vector<8x16xf32>
    %9 = arith.maximumf %3, %8 : vector<8x16xf32>
    %10 = math.absf %3 : vector<8x16xf32>
    %cst_10 = arith.constant 0.000000e+00 : f32
    %11 = vector.broadcast %cst_10 : f32 to vector<8x16xf32>
    %12 = arith.subf %11, %10 : vector<8x16xf32>
    %13 = math.exp %12 : vector<8x16xf32>
    %14 = math.log1p %13 : vector<8x16xf32>
    %15 = arith.addf %9, %14 : vector<8x16xf32>
    %cst_11 = arith.constant dense<0.000000e+00> : vector<8xf32>
    %16 = vector.multi_reduction <add>, %15, %cst_11 [1] : vector<8x16xf32> to vector<8xf32>
    %17 = vector.shape_cast %16 : vector<8xf32> to vector<8x1xf32>
    %cst_12 = arith.constant 0.000000e+00 : f32
    %18 = vector.broadcast %cst_12 : f32 to vector<8x1xf32>
    %19 = arith.maximumf %4, %18 : vector<8x1xf32>
    %20 = math.absf %4 : vector<8x1xf32>
    %cst_13 = arith.constant 0.000000e+00 : f32
    %21 = vector.broadcast %cst_13 : f32 to vector<8x1xf32>
    %22 = arith.subf %21, %20 : vector<8x1xf32>
    %23 = math.exp %22 : vector<8x1xf32>
    %24 = math.log1p %23 : vector<8x1xf32>
    %25 = arith.addf %19, %24 : vector<8x1xf32>
    %cst_14 = arith.constant 0.000000e+00 : f32
    %26 = vector.broadcast %cst_14 : f32 to vector<8x1xf32>
    %27 = arith.subf %26, %5 : vector<8x1xf32>
    %cst_15 = arith.constant 0.000000e+00 : f32
    %28 = vector.broadcast %cst_15 : f32 to vector<8x1xf32>
    %29 = arith.maximumf %27, %28 : vector<8x1xf32>
    %30 = math.absf %27 : vector<8x1xf32>
    %cst_16 = arith.constant 0.000000e+00 : f32
    %31 = vector.broadcast %cst_16 : f32 to vector<8x1xf32>
    %32 = arith.subf %31, %30 : vector<8x1xf32>
    %33 = math.exp %32 : vector<8x1xf32>
    %34 = math.log1p %33 : vector<8x1xf32>
    %35 = arith.addf %29, %34 : vector<8x1xf32>
    %36 = arith.subf %25, %4 : vector<8x1xf32>
    %37 = arith.mulf %6, %36 : vector<8x1xf32>
    %38 = arith.mulf %7, %25 : vector<8x1xf32>
    %39 = arith.mulf %7, %35 : vector<8x1xf32>
    %40 = arith.subf %17, %25 : vector<8x1xf32>
    %41 = arith.mulf %6, %40 : vector<8x1xf32>
    %42 = tpu.iota {dimensions = array<i32: 1>} : vector<8x8xi32>
    %cst_17 = arith.constant 0.000000e+00 : f32
    %43 = vector.broadcast %cst_17 : f32 to vector<8x8xf32>
    %c0_i32_18 = arith.constant 0 : i32
    %44 = vector.broadcast %c0_i32_18 : i32 to vector<8x8xi32>
    %45 = arith.cmpi eq, %42, %44 : vector<8x8xi32>
    %46 = vector.shape_cast %37 : vector<8x1xf32> to vector<8x1xf32>
    %47 = vector.broadcast %46 : vector<8x1xf32> to vector<8x8xf32>
    %48 = arith.select %45, %47, %43 : vector<8x8xi1>, vector<8x8xf32>
    %c1_i32 = arith.constant 1 : i32
    %49 = vector.broadcast %c1_i32 : i32 to vector<8x8xi32>
    %50 = arith.cmpi eq, %42, %49 : vector<8x8xi32>
    %51 = vector.shape_cast %38 : vector<8x1xf32> to vector<8x1xf32>
    %52 = vector.broadcast %51 : vector<8x1xf32> to vector<8x8xf32>
    %53 = arith.select %50, %52, %43 : vector<8x8xi1>, vector<8x8xf32>
    %54 = arith.addf %48, %53 : vector<8x8xf32>
    %c2_i32 = arith.constant 2 : i32
    %55 = vector.broadcast %c2_i32 : i32 to vector<8x8xi32>
    %56 = arith.cmpi eq, %42, %55 : vector<8x8xi32>
    %57 = vector.shape_cast %39 : vector<8x1xf32> to vector<8x1xf32>
    %58 = vector.broadcast %57 : vector<8x1xf32> to vector<8x8xf32>
    %59 = arith.select %56, %58, %43 : vector<8x8xi1>, vector<8x8xf32>
    %60 = arith.addf %54, %59 : vector<8x8xf32>
    %c3_i32 = arith.constant 3 : i32
    %61 = vector.broadcast %c3_i32 : i32 to vector<8x8xi32>
    %62 = arith.cmpi eq, %42, %61 : vector<8x8xi32>
    %63 = vector.shape_cast %41 : vector<8x1xf32> to vector<8x1xf32>
    %64 = vector.broadcast %63 : vector<8x1xf32> to vector<8x8xf32>
    %65 = arith.select %62, %64, %43 : vector<8x8xi1>, vector<8x8xf32>
    %66 = arith.addf %60, %65 : vector<8x8xf32>
    %c4_i32 = arith.constant 4 : i32
    %67 = vector.broadcast %c4_i32 : i32 to vector<8x8xi32>
    %68 = arith.cmpi eq, %42, %67 : vector<8x8xi32>
    %69 = vector.shape_cast %6 : vector<8x1xf32> to vector<8x1xf32>
    %70 = vector.broadcast %69 : vector<8x1xf32> to vector<8x8xf32>
    %71 = arith.select %68, %70, %43 : vector<8x8xi1>, vector<8x8xf32>
    %72 = arith.addf %66, %71 : vector<8x8xf32>
    %c5_i32 = arith.constant 5 : i32
    %73 = vector.broadcast %c5_i32 : i32 to vector<8x8xi32>
    %74 = arith.cmpi eq, %42, %73 : vector<8x8xi32>
    %75 = vector.shape_cast %7 : vector<8x1xf32> to vector<8x1xf32>
    %76 = vector.broadcast %75 : vector<8x1xf32> to vector<8x8xf32>
    %77 = arith.select %74, %76, %43 : vector<8x8xi1>, vector<8x8xf32>
    %78 = arith.addf %72, %77 : vector<8x8xf32>
    %c0_19 = arith.constant 0 : index
    %c0_20 = arith.constant 0 : index
    %79 = vector.load %arg6[%c0_19, %c0_20] : memref<1x8xf32, #tpu.memory_space<vmem>>, vector<1x8xf32>
    %cst_21 = arith.constant dense<0.000000e+00> : vector<8xf32>
    %80 = vector.multi_reduction <add>, %78, %cst_21 [0] : vector<8x8xf32> to vector<8xf32>
    %81 = vector.shape_cast %80 : vector<8xf32> to vector<1x8xf32>
    %82 = arith.addf %79, %81 : vector<1x8xf32>
    %c0_22 = arith.constant 0 : index
    %c0_23 = arith.constant 0 : index
    %83 = vector.load %arg6[%c0_22, %c0_23] : memref<1x8xf32, #tpu.memory_space<vmem>>, vector<1x8xf32>
    tpu.vector_store %arg6[%c0_22, %c0_23], %82 {strides = array<i32>} : memref<1x8xf32, #tpu.memory_space<vmem>>, vector<1x8xf32>,
    return
  }
  func.func @transform_0(%arg0: i32) -> (i32, i32) {
    %c0_i32 = arith.constant 0 : i32
    %c0_i32_0 = arith.constant 0 : i32
    return %arg0, %c0_i32 : i32, i32
  }
  func.func @transform_1(%arg0: i32) -> (i32, i32) {
    %c0_i32 = arith.constant 0 : i32
    %c0_i32_0 = arith.constant 0 : i32
    return %arg0, %c0_i32 : i32, i32
  }
  func.func @transform_2(%arg0: i32) -> (i32, i32) {
    %c0_i32 = arith.constant 0 : i32
    %c0_i32_0 = arith.constant 0 : i32
    return %arg0, %c0_i32 : i32, i32
  }
  func.func @transform_3(%arg0: i32) -> (i32, i32) {
    %c0_i32 = arith.constant 0 : i32
    %c0_i32_0 = arith.constant 0 : i32
    return %arg0, %c0_i32 : i32, i32
  }
  func.func @transform_4(%arg0: i32) -> (i32, i32) {
    %c0_i32 = arith.constant 0 : i32
    %c0_i32_0 = arith.constant 0 : i32
    return %arg0, %c0_i32 : i32, i32
  }
  func.func @transform_5(%arg0: i32) -> (i32, i32) {
    %c0_i32 = arith.constant 0 : i32
    %c0_i32_0 = arith.constant 0 : i32
    %c0_i32_1 = arith.constant 0 : i32
    return %c0_i32, %c0_i32_0 : i32, i32
  }
}

</mosaic_0001>

<llo_original>
// kernel: tpu_custom_call.1
$region0: #{tpu_custom_call.1}
  #allocation0 [shape = 'u32[]', space=smem, size = 0x4, offset = 0x4, fixed_abs, tag = 'smem constant byte address 0x4 - core index']
  #allocation1 [shape = 'u32[72,128]{1,0:T(1,128)}', space=vmem, size = 0x9000, scoped, tag = 'internal scratch']
  %s0 = inlined_call_operand.vmem [shape: f32[16,16], index: 0, kind: input, shape index: {}]
  %s1 = inlined_call_operand.vmem [shape: f32[16,1], index: 1, kind: input, shape index: {}]
  %s2 = inlined_call_operand.vmem [shape: f32[16,1], index: 2, kind: input, shape index: {}]
  %s3 = inlined_call_operand.vmem [shape: f32[16,1], index: 3, kind: input, shape index: {}]
  %s4 = inlined_call_operand.vmem [shape: f32[16,1], index: 4, kind: input, shape index: {}]
  %s5 = inlined_call_operand.hbm [shape: f32[1,8], index: 5, kind: output, shape index: {}]
  %s6 = sld [smem:[#allocation0]]
  $region57: #{tpu_custom_call.1} parent=0
    _
  %s8 = ssub.s32 1, %s6
  %s9 = scalar_select 0, %s8, %s6
  $region1: #{tpu_custom_call.1} parent=0
    #allocation2 [shape = 'u8[512]{0}', space=vmem, size = 0x400, scoped, tag = 'output window, operand 0, single buffered']
    #allocation3 [shape = 's32[2]{0}', space=sflag, size = 0x8, scoped, tag = 'scoped memory for tpu_custom_call.1']
    %10 = vsyncpa [#allocation3], 0
    loop: start=0, step=1, limit=4
    $region2: #{tpu_custom_call.1} parent=1 // loop_pre_header
      _
    $region3: #{tpu_custom_call.1} parent=1 // loop_header
      %s12 = sphi 0, %s16
      %p13 = scmp.ge.s32.totalorder %s12, 4
      %s22 = sphi 0, %s24
      %s25 = sphi 0, %s22
      %s26 = sphi 0, %s25
      %s42 = sphi 0, %s26
      %s48 = sphi 0, %s50
      %s51 = sphi 0, %s48
      %s52 = sphi 0, %s51
      %s68 = sphi 0, %s52
      %s74 = sphi 0, %s76
      %s77 = sphi 0, %s74
      %s78 = sphi 0, %s77
      %s94 = sphi 0, %s78
      %s100 = sphi 0, %s102
      %s103 = sphi 0, %s100
      %s104 = sphi 0, %s103
      %s120 = sphi 0, %s104
      %s126 = sphi 0, %s128
      %s129 = sphi 0, %s126
      %s130 = sphi 0, %s129
      %s146 = sphi 0, %s130
      %s150 = sphi 0, %s150
      %s152 = sphi 0, %s150
      %s153 = sphi 0, %s152
      %s167 = sphi 0, %s153
    $region4: #{tpu_custom_call.1} parent=1 // loop_header_branch
      %15 = sbr.rel (%p13) target = $region8
    $region5: #{tpu_custom_call.1} parent=1 // loop_body
      %s17 = ssub.s32 %s12, 1
      %s18 = ssub.s32 %s12, 2
      %s19 = sadd.s32 %s12, 1
      %s20 = ssub.s32 %s12, %s19
      %p21 = scmp.eq.s32.totalorder %s20, 0
      %s23 = sadd.s32 %s22, 1
      %s24 = scalar_select %p21, %s22, %s23
      %p27 = pneg %p21
      %p28 = scmp.eq.s32.totalorder %s12, 1
      %p29 = por %p27, %p28
      %p30 = scmp.ne.s32.totalorder %s22, %s25
      %p31 = scmp.eq.s32.totalorder %s12, 0
      %p32 = por %p30, %p31
      %p33 = scmp.ne.s32.totalorder %s22, %s25
      %p34 = scmp.eq.s32.totalorder %s17, 1
      %p35 = por %p33, %p34
      %p36 = scmp.ne.s32.totalorder %s25, %s26
      %p37 = scmp.eq.s32.totalorder %s17, 0
      %p38 = por %p36, %p37
      %p39 = scmp.ne.s32.totalorder %s25, %s26
      %p40 = scmp.eq.s32.totalorder %s18, 1
      %p41 = por %p39, %p40
      %p43 = scmp.ne.s32.totalorder %s26, %s42
      %p44 = scmp.eq.s32.totalorder %s18, 0
      %p45 = por %p43, %p44
      %s46 = ssub.s32 %s12, %s19
      %p47 = scmp.eq.s32.totalorder %s46, 0
      %s49 = sadd.s32 %s48, 1
      %s50 = scalar_select %p47, %s48, %s49
      %p53 = pneg %p47
      %p54 = scmp.eq.s32.totalorder %s12, 1
      %p55 = por %p53, %p54
      %p56 = scmp.ne.s32.totalorder %s48, %s51
      %p57 = scmp.eq.s32.totalorder %s12, 0
      %p58 = por %p56, %p57
      %p59 = scmp.ne.s32.totalorder %s48, %s51
      %p60 = scmp.eq.s32.totalorder %s17, 1
      %p61 = por %p59, %p60
      %p62 = scmp.ne.s32.totalorder %s51, %s52
      %p63 = scmp.eq.s32.totalorder %s17, 0
      %p64 = por %p62, %p63
      %p65 = scmp.ne.s32.totalorder %s51, %s52
      %p66 = scmp.eq.s32.totalorder %s18, 1
      %p67 = por %p65, %p66
      %p69 = scmp.ne.s32.totalorder %s52, %s68
      %p70 = scmp.eq.s32.totalorder %s18, 0
      %p71 = por %p69, %p70
      %s72 = ssub.s32 %s12, %s19
      %p73 = scmp.eq.s32.totalorder %s72, 0
      %s75 = sadd.s32 %s74, 1
      %s76 = scalar_select %p73, %s74, %s75
      %p79 = pneg %p73
      %p80 = scmp.eq.s32.totalorder %s12, 1
      %p81 = por %p79, %p80
      %p82 = scmp.ne.s32.totalorder %s74, %s77
      %p83 = scmp.eq.s32.totalorder %s12, 0
      %p84 = por %p82, %p83
      %p85 = scmp.ne.s32.totalorder %s74, %s77
      %p86 = scmp.eq.s32.totalorder %s17, 1
      %p87 = por %p85, %p86
      %p88 = scmp.ne.s32.totalorder %s77, %s78
      %p89 = scmp.eq.s32.totalorder %s17, 0
      %p90 = por %p88, %p89
      %p91 = scmp.ne.s32.totalorder %s77, %s78
      %p92 = scmp.eq.s32.totalorder %s18, 1
      %p93 = por %p91, %p92
      %p95 = scmp.ne.s32.totalorder %s78, %s94
      %p96 = scmp.eq.s32.totalorder %s18, 0
      %p97 = por %p95, %p96
      %s98 = ssub.s32 %s12, %s19
      %p99 = scmp.eq.s32.totalorder %s98, 0
      %s101 = sadd.s32 %s100, 1
      %s102 = scalar_select %p99, %s100, %s101
      %p105 = pneg %p99
      %p106 = scmp.eq.s32.totalorder %s12, 1
      %p107 = por %p105, %p106
      %p108 = scmp.ne.s32.totalorder %s100, %s103
      %p109 = scmp.eq.s32.totalorder %s12, 0
      %p110 = por %p108, %p109
      %p111 = scmp.ne.s32.totalorder %s100, %s103
      %p112 = scmp.eq.s32.totalorder %s17, 1
      %p113 = por %p111, %p112
      %p114 = scmp.ne.s32.totalorder %s103, %s104
      %p115 = scmp.eq.s32.totalorder %s17, 0
      %p116 = por %p114, %p115
      %p117 = scmp.ne.s32.totalorder %s103, %s104
      %p118 = scmp.eq.s32.totalorder %s18, 1
      %p119 = por %p117, %p118
      %p121 = scmp.ne.s32.totalorder %s104, %s120
      %p122 = scmp.eq.s32.totalorder %s18, 0
      %p123 = por %p121, %p122
      %s124 = ssub.s32 %s12, %s19
      %p125 = scmp.eq.s32.totalorder %s124, 0
      %s127 = sadd.s32 %s126, 1
      %s128 = scalar_select %p125, %s126, %s127
      %p131 = pneg %p125
      %p132 = scmp.eq.s32.totalorder %s12, 1
      %p133 = por %p131, %p132
      %p134 = scmp.ne.s32.totalorder %s126, %s129
      %p135 = scmp.eq.s32.totalorder %s12, 0
      %p136 = por %p134, %p135
      %p137 = scmp.ne.s32.totalorder %s126, %s129
      %p138 = scmp.eq.s32.totalorder %s17, 1
      %p139 = por %p137, %p138
      %p140 = scmp.ne.s32.totalorder %s129, %s130
      %p141 = scmp.eq.s32.totalorder %s17, 0
      %p142 = por %p140, %p141
      %p143 = scmp.ne.s32.totalorder %s129, %s130
      %p144 = scmp.eq.s32.totalorder %s18, 1
      %p145 = por %p143, %p144
      %p147 = scmp.ne.s32.totalorder %s130, %s146
      %p148 = scmp.eq.s32.totalorder %s18, 0
      %p149 = por %p147, %p148
      %s151 = sadd.s32 %s150, 1
      %p154 = scmp.eq.s32.totalorder %s12, 1
      %p155 = scmp.ne.s32.totalorder %s150, %s152
      %p156 = scmp.eq.s32.totalorder %s12, 0
      %p157 = por %p155, %p156
      %p158 = scmp.ne.s32.totalorder %s150, %s152
      %p159 = scmp.eq.s32.totalorder %s17, 1
      %p160 = por %p158, %p159
      %p161 = scmp.ne.s32.totalorder %s152, %s153
      %p162 = scmp.eq.s32.totalorder %s17, 0
      %p163 = por %p161, %p162
      %p164 = scmp.ne.s32.totalorder %s152, %s153
      %p165 = scmp.eq.s32.totalorder %s18, 1
      %p166 = por %p164, %p165
      %p168 = scmp.ne.s32.totalorder %s153, %s167
      %p169 = scmp.eq.s32.totalorder %s18, 0
      %p170 = por %p168, %p169
      %p171 = scmp.le.s32.totalorder 1, %s12
      %p172 = scmp.lt.s32.totalorder %s12, 3
      %p173 = pnand %p171, %p172
      %p174 = pneg %p173
      // Predicated region
      $region9: #{tpu_custom_call.1} parent=5 // pred_check
        _
      $region10: #{tpu_custom_call.1} parent=5 // pred_check_branch
        %176 = sbr.rel (%p173) target = $region12
      $region11: #{tpu_custom_call.1} parent=5 // pred_region
        %s177 = ssub.s32 %s12, 1
      $region12: #{tpu_custom_call.1} parent=5 // pred_fallthru
        _
      %p178 = scmp.lt.s32.totalorder %s12, 2
      // Predicated region
      $region13: #{tpu_custom_call.1} parent=5 // pred_check
        %p179 = pneg %p178
      $region14: #{tpu_custom_call.1} parent=5 // pred_check_branch
        %181 = sbr.rel (%p179) target = $region16
      $region15: #{tpu_custom_call.1} parent=5 // pred_region
        // Predicated region
        $region17: #{tpu_custom_call.1} parent=15 // pred_check
          %p182 = pneg %p32
        $region18: #{tpu_custom_call.1} parent=15 // pred_check_branch
          %184 = sbr.rel (%p182) target = $region20
        $region19: #{tpu_custom_call.1} parent=15 // pred_region
          %p185 = scmp.lt.s32.totalorder %s12, 1
          %s186 = scalar_select %p185, %s12, 1
          %s187 = smul.addr %s186, 8
          %s188 = scalar_lea.vmem %s0, %s187
        $region20: #{tpu_custom_call.1} parent=15 // pred_fallthru
          _
        // Predicated region
        $region21: #{tpu_custom_call.1} parent=15 // pred_check
          %p189 = pneg %p58
        $region22: #{tpu_custom_call.1} parent=15 // pred_check_branch
          %191 = sbr.rel (%p189) target = $region24
        $region23: #{tpu_custom_call.1} parent=15 // pred_region
          %p192 = scmp.lt.s32.totalorder %s12, 1
          %s193 = scalar_select %p192, %s12, 1
          %s194 = smul.addr %s193, 8
          %s195 = scalar_lea.vmem %s1, %s194
        $region24: #{tpu_custom_call.1} parent=15 // pred_fallthru
          _
        // Predicated region
        $region25: #{tpu_custom_call.1} parent=15 // pred_check
          %p196 = pneg %p84
        $region26: #{tpu_custom_call.1} parent=15 // pred_check_branch
          %198 = sbr.rel (%p196) target = $region28
        $region27: #{tpu_custom_call.1} parent=15 // pred_region
          %p199 = scmp.lt.s32.totalorder %s12, 1
          %s200 = scalar_select %p199, %s12, 1
          %s201 = smul.addr %s200, 8
          %s202 = scalar_lea.vmem %s2, %s201
        $region28: #{tpu_custom_call.1} parent=15 // pred_fallthru
          _
        // Predicated region
        $region29: #{tpu_custom_call.1} parent=15 // pred_check
          %p203 = pneg %p110
        $region30: #{tpu_custom_call.1} parent=15 // pred_check_branch
          %205 = sbr.rel (%p203) target = $region32
        $region31: #{tpu_custom_call.1} parent=15 // pred_region
          %p206 = scmp.lt.s32.totalorder %s12, 1
          %s207 = scalar_select %p206, %s12, 1
          %s208 = smul.addr %s207, 8
          %s209 = scalar_lea.vmem %s3, %s208
        $region32: #{tpu_custom_call.1} parent=15 // pred_fallthru
          _
        // Predicated region
        $region33: #{tpu_custom_call.1} parent=15 // pred_check
          %p210 = pneg %p136
        $region34: #{tpu_custom_call.1} parent=15 // pred_check_branch
          %212 = sbr.rel (%p210) target = $region36
        $region35: #{tpu_custom_call.1} parent=15 // pred_region
          %p213 = scmp.lt.s32.totalorder %s12, 1
          %s214 = scalar_select %p213, %s12, 1
          %s215 = smul.addr %s214, 8
          %s216 = scalar_lea.vmem %s4, %s215
        $region36: #{tpu_custom_call.1} parent=15 // pred_fallthru
          _
      $region16: #{tpu_custom_call.1} parent=5 // pred_fallthru
        _
      %p217 = scmp.le.s32.totalorder 1, %s12
      %p218 = scmp.lt.s32.totalorder %s12, 3
      %p219 = pnand %p217, %p218
      %p220 = pneg %p219
      // Predicated region
      $region37: #{tpu_custom_call.1} parent=5 // pred_check
        _
      $region38: #{tpu_custom_call.1} parent=5 // pred_check_branch
        %222 = sbr.rel (%p219) target = $region40
      $region39: #{tpu_custom_call.1} parent=5 // pred_region
        %s223 = ssub.s32 %s12, 1
        %p224 = scmp.lt.s32.totalorder %s17, 1
        %s225 = scalar_select %p224, %s17, 1
        %s226 = smul.addr %s225, 8
        %s227 = scalar_lea.vmem %s0, %s226
        %p228 = pneg %p38
        %p229 = pneg %p35
        %p230 = scmp.lt.s32.totalorder %s17, 1
        %s231 = scalar_select %p230, %s17, 1
        %s232 = smul.addr %s231, 8
        %s233 = scalar_lea.vmem %s1, %s232
        %p234 = pneg %p64
        %p235 = pneg %p61
        %p236 = scmp.lt.s32.totalorder %s17, 1
        %s237 = scalar_select %p236, %s17, 1
        %s238 = smul.addr %s237, 8
        %s239 = scalar_lea.vmem %s2, %s238
        %p240 = pneg %p90
        %p241 = pneg %p87
        %p242 = scmp.lt.s32.totalorder %s17, 1
        %s243 = scalar_select %p242, %s17, 1
        %s244 = smul.addr %s243, 8
        %s245 = scalar_lea.vmem %s3, %s244
        %p246 = pneg %p116
        %p247 = pneg %p113
        %p248 = scmp.lt.s32.totalorder %s17, 1
        %s249 = scalar_select %p248, %s17, 1
        %s250 = smul.addr %s249, 8
        %s251 = scalar_lea.vmem %s4, %s250
        %p252 = pneg %p142
        %p253 = pneg %p139
        %p254 = pneg %p163
        %p255 = pneg %p160
        %p256 = scmp.lt.s32.totalorder %s17, 1
        %s257 = scalar_select %p256, %s17, 1
        %s258 = smul.addr %s257, 8
        %s259 = scalar_lea.vmem %s0, %s258
        %p260 = scmp.lt.s32.totalorder %s17, 1
        %s261 = scalar_select %p260, %s17, 1
        %s262 = smul.addr %s261, 8
        %s263 = scalar_lea.vmem %s1, %s262
        %p264 = scmp.lt.s32.totalorder %s17, 1
        %s265 = scalar_select %p264, %s17, 1
        %s266 = smul.addr %s265, 8
        %s267 = scalar_lea.vmem %s2, %s266
        %p268 = scmp.lt.s32.totalorder %s17, 1
        %s269 = scalar_select %p268, %s17, 1
        %s270 = smul.addr %s269, 8
        %s271 = scalar_lea.vmem %s3, %s270
        %p272 = scmp.lt.s32.totalorder %s17, 1
        %s273 = scalar_select %p272, %s17, 1
        %s274 = smul.addr %s273, 8
        %s275 = scalar_lea.vmem %s4, %s274
        %p276 = scmp.eq.s32.totalorder %s17, 0
        // Predicated region
        $region41: #{tpu_custom_call.1} parent=39 // pred_check
          %p277 = pneg %p276
        $region42: #{tpu_custom_call.1} parent=39 // pred_check_branch
          %279 = sbr.rel (%p277) target = $region44
        $region43: #{tpu_custom_call.1} parent=39 // pred_region
          %vm280 = vcmask 57344
          %281 = vst.msk [vmem:[#allocation2] sm:$0x1] %vm280, 0.0
        $region44: #{tpu_custom_call.1} parent=39 // pred_fallthru
          _
        %v282 = vld [vmem:[%s259] sm:$0xff]
        %v283 = vld [vmem:[%s263] sm:$0xff]
        %v284 = vld [vmem:[%s267] sm:$0xff]
        %v285 = vld [vmem:[%s271] sm:$0xff]
        %v286 = vld [vmem:[%s275] sm:$0xff]
        %v287 = vmax.f32 %v282, 0.0
        %v288 = vand.u32 2147483647, %v282
        %v289 = vsub.f32 0.0, %v288
        %v290 = vmul.f32 %v289, 1.442695
        %v291 = vpow.pop %v290
        %v292 = vadd.f32 %v291, 1.0
        %v293 = vlog2.pop %v292
        %v294 = vmul.f32 %v293, 0.6931472
        %v295 = vmul.f32 -0.5, %v291
        %v296 = vadd.f32 %v295, 1.0
        %v297 = vmul.f32 %v296, %v291
        %v298 = vand.u32 2147483647, %v291
        %vm299 = vcmp.lt.f32.partialorder %v298, 0.0004427343
        %v300 = vsel %vm299, %v297, %v294
        %v301 = vadd.f32 %v287, %v300
        %vm302 = vcmask 130048
        %v303 = vsel %vm302, %v301, 0.0
        %304 = vadd.xlane.f32.xlu0 %v303
        %v305 = vpop.xlane.xlu0 %304
        %v306 = vmax.f32 %v283, 0.0
        %v307 = vand.u32 2147483647, %v283
        %v308 = vsub.f32 0.0, %v307
        %v309 = vmul.f32 %v308, 1.442695
        %v310 = vpow.pop %v309
        %v311 = vadd.f32 %v310, 1.0
        %v312 = vlog2.pop %v311
        %v313 = vmul.f32 %v312, 0.6931472
        %v314 = vmul.f32 -0.5, %v310
        %v315 = vadd.f32 %v314, 1.0
        %v316 = vmul.f32 %v315, %v310
        %v317 = vand.u32 2147483647, %v310
        %vm318 = vcmp.lt.f32.partialorder %v317, 0.0004427343
        %v319 = vsel %vm318, %v316, %v313
        %v320 = vadd.f32 %v306, %v319
        %v321 = vsub.f32 0.0, %v284
        %v322 = vmax.f32 %v321, 0.0
        %v323 = vand.u32 2147483647, %v321
        %v324 = vsub.f32 0.0, %v323
        %v325 = vmul.f32 %v324, 1.442695
        %v326 = vpow.pop %v325
        %v327 = vadd.f32 %v326, 1.0
        %v328 = vlog2.pop %v327
        %v329 = vmul.f32 %v328, 0.6931472
        %v330 = vmul.f32 -0.5, %v326
        %v331 = vadd.f32 %v330, 1.0
        %v332 = vmul.f32 %v331, %v326
        %v333 = vand.u32 2147483647, %v326
        %vm334 = vcmp.lt.f32.partialorder %v333, 0.0004427343
        %v335 = vsel %vm334, %v332, %v329
        %v336 = vadd.f32 %v322, %v335
        %v337 = vsub.f32 %v320, %v283
        %v338 = vmul.f32 %v285, %v337
        %v339 = vmul.f32 %v286, %v320
        %v340 = vmul.f32 %v286, %v336
        %v341 = vsub.f32 %v305, %v320
        %v342 = vmul.f32 %v285, %v341
        %v343 = vlaneseq
        %v344 = vand.u32 %v343, 127
        %vm345 = vcmp.eq.s32.totalorder %v344, 0
        %347 = vset.pattern.permute.xlu0 0
        %348 = vperm.xlu0 %347, %v338
        %v349 = vpop.permute.xlu0 %348
        %v351 = vsel %vm345, %v349, 0.0
        %vm352 = vcmp.eq.s32.totalorder %v344, 1
        %354 = vset.pattern.permute.xlu0 0
        %355 = vperm.xlu0 %354, %v339
        %v356 = vpop.permute.xlu0 %355
        %v358 = vsel %vm352, %v356, 0.0
        %v359 = vadd.f32 %v351, %v358
        %vm360 = vcmp.eq.s32.totalorder %v344, 2
        %362 = vset.pattern.permute.xlu0 0
        %363 = vperm.xlu0 %362, %v340
        %v364 = vpop.permute.xlu0 %363
        %v366 = vsel %vm360, %v364, 0.0
        %v367 = vadd.f32 %v359, %v366
        %vm368 = vcmp.eq.s32.totalorder %v344, 3
        %370 = vset.pattern.permute.xlu0 0
        %371 = vperm.xlu0 %370, %v342
        %v372 = vpop.permute.xlu0 %371
        %v374 = vsel %vm368, %v372, 0.0
        %v375 = vadd.f32 %v367, %v374
        %vm376 = vcmp.eq.s32.totalorder %v344, 4
        %378 = vset.pattern.permute.xlu0 0
        %379 = vperm.xlu0 %378, %v285
        %v380 = vpop.permute.xlu0 %379
        %v382 = vsel %vm376, %v380, 0.0
        %v383 = vadd.f32 %v375, %v382
        %vm384 = vcmp.eq.s32.totalorder %v344, 5
        %386 = vset.pattern.permute.xlu0 0
        %387 = vperm.xlu0 %386, %v286
        %v388 = vpop.permute.xlu0 %387
        %v390 = vsel %vm384, %v388, 0.0
        %v391 = vadd.f32 %v383, %v390
        %v392 = vld [vmem:[#allocation2] sm:$0x1]
        %vm393 = vcmask 64512
        %v394 = vsel %vm393, %v391, 0.0
        %v395 = vrot.slane %v394, 4
        %v396 = vadd.f32 %v394, %v395
        %v397 = vrot.slane %v396, 2
        %v398 = vadd.f32 %v396, %v397
        %v399 = vrot.slane %v398, 1
        %v400 = vadd.f32 %v398, %v399
        %v401 = vadd.f32 %v392, %v400
        %vm402 = vcmask 57344
        %403 = vst.msk [vmem:[#allocation2] sm:$0x1] %vm402, %v401
        // Predicated region
        $region45: #{tpu_custom_call.1} parent=39 // pred_check
          %p404 = pneg %p160
        $region46: #{tpu_custom_call.1} parent=39 // pred_check_branch
          %406 = sbr.rel (%p404) target = $region48
        $region47: #{tpu_custom_call.1} parent=39 // pred_region
          %408 = vsyncadd [#allocation3], 0
          %s410 = sshll.u32 [#allocation2], 4
          %s411 = int_to_ptr.vmem [resolvable:$true] %s410
          %s412 = sshll.u32 %s5, 4
          %s413 = int_to_ptr.hbm [resolvable:$true] %s412
          %415 = dma.vmem_to_hbm [thread:$0]  %s411, 16, %s413, [#allocation3]
        $region48: #{tpu_custom_call.1} parent=39 // pred_fallthru
          _
        // Predicated region
        $region49: #{tpu_custom_call.1} parent=39 // pred_check
          %p416 = pneg %p160
        $region50: #{tpu_custom_call.1} parent=39 // pred_check_branch
          %418 = sbr.rel (%p416) target = $region52
        $region51: #{tpu_custom_call.1} parent=39 // pred_region
          %420 = dma.done [#allocation3], 16
        $region52: #{tpu_custom_call.1} parent=39 // pred_fallthru
          _
      $region40: #{tpu_custom_call.1} parent=5 // pred_fallthru
        _
      %p421 = scmp.le.s32.totalorder 2, %s12
      // Predicated region
      $region53: #{tpu_custom_call.1} parent=5 // pred_check
        %p422 = pneg %p421
      $region54: #{tpu_custom_call.1} parent=5 // pred_check_branch
        %424 = sbr.rel (%p422) target = $region56
      $region55: #{tpu_custom_call.1} parent=5 // pred_region
        %s425 = ssub.s32 %s12, 2
      $region56: #{tpu_custom_call.1} parent=5 // pred_fallthru
        _
    $region6: #{tpu_custom_call.1} parent=1 // loop_footer
      %s16 = sadd.s32 1, %s12
    $region7: #{tpu_custom_call.1} parent=1 // loop_footer_branch
      %11 = sbr.rel target = $region3
    $region8: #{tpu_custom_call.1} parent=1 // loop_exit
      _
    %426 = vsyncpa [#allocation3], 1
    %s427 = scalar_lea.sflag [#allocation3], 1
    %428 = vsyncpa %s427, 1

</llo_original>
